<compile_context>
chip_gen: v5e
topology: v5e:2x2
jax: 0.10.0
libtpu: 0.0.40
codegen_flags: <defaults>
</compile_context>

<pallas_src>
import functools
from typing import List

import jax
import jax.numpy as jnp
from jax.experimental import pallas as pl
from jax.experimental.pallas import tpu as pltpu


LANE = 128              # batch tiles are multiples of this (lane width)
HEAD_ROWS = 8           # q1/q2 padded to a full sublane group for lane-dense stores
DEFAULT_BIG_TILE = 1024 # cap on the batch tile size


def _round_up(x: int, m: int) -> int:
    return (x + m - 1) // m * m


def _choose_tile(b128: int, big_tile: int) -> int:
    """Pick a batch tile (multiple of 128). For larger batches keep >=2 grid
    steps so the 'parallel' axis can shard across v7x's two TensorCores."""
    if b128 <= LANE:
        return LANE
    half = _round_up(b128 // 2, LANE)
    return min(big_tile, half)


# --------------------------------------------------------------------------- #
# Kernel
# --------------------------------------------------------------------------- #
def _make_doubleq_kernel(n_hidden: int):
    """Fused DoubleQ kernel for `n_hidden` hidden layers (both nets fused).

    All activations are (features, TB): features on sublanes, batch on lanes.
    """

    def kernel(*refs):
        x_ref = refs[0]                       # (din_pad, TB)  bf16
        w1_ref, b1_ref = refs[1], refs[2]     # (hp0, din_pad) bf16 / (hp0, 1) f32
        hidden_refs = refs[3:3 + 2 * (n_hidden - 1)]
        wq_ref = refs[3 + 2 * (n_hidden - 1)]  # (8, hp_last) bf16
        bq_ref = refs[4 + 2 * (n_hidden - 1)]  # (8, 1)       f32
        out_ref = refs[-1]                     # (8, TB)      f32

        # Layer 1: one matmul for both Q-nets (rows 0:H -> net1, H:2H -> net2).
        h = jnp.dot(w1_ref[...], x_ref[...],
                    preferred_element_type=jnp.float32)
        h = jnp.maximum(h + b1_ref[...], 0.0)           # bias + ReLU in f32

        # Remaining hidden layers: block-diagonal fused (pre-transposed) weights.
        for i in range(n_hidden - 1):
            w = hidden_refs[2 * i][...]
            b = hidden_refs[2 * i + 1][...]
            h = jnp.dot(w, h.astype(jnp.bfloat16),
                        preferred_element_type=jnp.float32)
            h = jnp.maximum(h + b, 0.0)

        # Heads: (8, hp_last) @ (hp_last, TB) -> (8, TB); rows 0/1 are q1/q2.
        q = jnp.dot(wq_ref[...], h.astype(jnp.bfloat16),
                    preferred_element_type=jnp.float32)
        out_ref[...] = (q + bq_ref[...]).astype(out_ref.dtype)

    return kernel


# --------------------------------------------------------------------------- #
# Parameter construction / packing
# --------------------------------------------------------------------------- #
def init_doubleq_params(key, obs_dim: int, action_dim: int,
                        hidden_sizes: List[int]):
    """Per-net parameters in (in, out) layout: [(W, b), ...] per network."""
    in_dim = obs_dim + action_dim
    nets = []
    for _ in range(2):                     # f1/q1 and f2/q2
        dims = [in_dim] + list(hidden_sizes) + [1]
        layers = []
        for li in range(len(dims) - 1):
            key, kw, kb = jax.random.split(key, 3)
            fan_in, fan_out = dims[li], dims[li + 1]
            scale = 1.0 / float(fan_in) ** 0.5
            w = jax.random.uniform(kw, (fan_in, fan_out), jnp.float32,
                                   -scale, scale)
            b = jax.random.uniform(kb, (fan_out,), jnp.float32, -scale, scale)
            layers.append((w, b))
        nets.append(layers)
    return nets[0], nets[1]


def pack_doubleq_params(params1, params2):
    """Fuse two Q-nets into block-diagonal, pre-transposed, lane-padded params.

    Returns (W1t, b1, W2t, b2, ..., Wq, bq):
      W1t : (hp0, din_pad)   bf16   rows 0:H net1, H:2H net2
      Wit : (hp_i, hp_{i-1}) bf16   block diagonal (transposed)
      Wq  : (8, hp_last)     bf16   row 0 = q1 head, row 1 = q2 head
      b*  : (hp_i, 1) / (8,1) f32 column biases
    """
    n_layers = len(params1)                # hidden layers + head
    n_hidden = n_layers - 1
    hidden = [params1[i][0].shape[1] for i in range(n_hidden)]
    hp = [max(LANE, _round_up(2 * h, LANE)) for h in hidden]
    din = params1[0][0].shape[0]
    din_pad = _round_up(din, 16)           # bf16 sublane-tile friendly

    packed = []

    # Layer 1: fuse along out_features (now rows), pad input dim.
    w1a, b1a = params1[0]
    w1b, b1b = params2[0]
    h0 = hidden[0]
    w1t = jnp.zeros((hp[0], din_pad), jnp.float32)
    w1t = w1t.at[:h0, :din].set(w1a.T)
    w1t = w1t.at[h0:2 * h0, :din].set(w1b.T)
    b1 = jnp.zeros((hp[0], 1), jnp.float32)
    b1 = b1.at[:h0, 0].set(b1a)
    b1 = b1.at[h0:2 * h0, 0].set(b1b)
    packed += [w1t.astype(jnp.bfloat16), b1]

    # Hidden layers 2..n: block-diagonal fused weights (transposed), zero-padded.
    for i in range(1, n_hidden):
        wa, ba = params1[i]
        wb, bb = params2[i]
        hin, hout = wa.shape
        wt = jnp.zeros((hp[i], hp[i - 1]), jnp.float32)
        wt = wt.at[:hout, :hin].set(wa.T)
        wt = wt.at[hout:2 * hout, hidden[i - 1]:hidden[i - 1] + hin].set(wb.T)
        b = jnp.zeros((hp[i], 1), jnp.float32)
        b = b.at[:hout, 0].set(ba)
        b = b.at[hout:2 * hout, 0].set(bb)
        packed += [wt.astype(jnp.bfloat16), b]

    # Heads: per-net (H_last, 1) -> rows 0/1 of an (8, hp[-1]) matrix.
    wqa, bqa = params1[-1]
    wqb, bqb = params2[-1]
    hlast = wqa.shape[0]
    wq = jnp.zeros((HEAD_ROWS, hp[-1]), jnp.float32)
    wq = wq.at[0, :hlast].set(wqa[:, 0])
    wq = wq.at[1, hidden[-1]:hidden[-1] + hlast].set(wqb[:, 0])
    bq = jnp.zeros((HEAD_ROWS, 1), jnp.float32)
    bq = bq.at[0, 0].set(bqa[0])
    bq = bq.at[1, 0].set(bqb[0])
    packed += [wq.astype(jnp.bfloat16), bq]

    return tuple(packed)


def _resident_spec(p):
    """Constant-index BlockSpec: weight stays VMEM-resident across grid steps."""
    nd = p.ndim
    return pl.BlockSpec(p.shape, lambda i, _nd=nd: (0,) * _nd)


# --------------------------------------------------------------------------- #
# Forward wrapper
# --------------------------------------------------------------------------- #
@functools.partial(jax.jit, static_argnames=("n_hidden", "big_tile"))
def doubleq_forward(observations, actions, packed_params, n_hidden,
                    big_tile=DEFAULT_BIG_TILE):
    obs = observations.astype(jnp.float32)
    act = actions.astype(jnp.float32)
    b = obs.shape[0]
    din = obs.shape[1] + act.shape[1]

    hp0, din_pad = packed_params[0].shape
    hp_last = packed_params[-2].shape[1]

    # One input stream: concat once (tiny copy), pad feature dim, transpose to
    # batch-on-lanes, cast to bf16 (matmul operand only -> halves input DMA).
    x = jnp.concatenate([obs, act], axis=-1)
    if din_pad != din:
        x = jnp.pad(x, ((0, 0), (0, din_pad - din)))
    xT = x.T.astype(jnp.bfloat16)                      # (din_pad, B)

    # Adaptive batch tiling.
    b128 = _round_up(b, LANE)
    tile_b = _choose_tile(b128, big_tile)
    b_pad = _round_up(b, tile_b)
    if b_pad != b:
        xT = jnp.pad(xT, ((0, 0), (0, b_pad - b)))

    grid = (b_pad // tile_b,)
    in_specs = [pl.BlockSpec((din_pad, tile_b), lambda i: (0, i))] + \
               [_resident_spec(p) for p in packed_params]
    out_specs = pl.BlockSpec((HEAD_ROWS, tile_b), lambda i: (0, i))

    # Advisory cost estimate (fused / padded dims).
    hid_wts = [packed_params[2 + 2 * i] for i in range(n_hidden - 1)]
    flops = 2 * b_pad * (din_pad * hp0
                         + sum(int(w.shape[0]) * int(w.shape[1]) for w in hid_wts)
                         + HEAD_ROWS * hp_last)
    param_bytes = sum(int(p.size) * p.dtype.itemsize for p in packed_params)
    bytes_accessed = 2 * b_pad * din_pad + 4 * HEAD_ROWS * b_pad + param_bytes
    cost = pl.CostEstimate(flops=flops, transcendentals=0,
                           bytes_accessed=bytes_accessed)

    # Raise the scoped VMEM limit only if the footprint could trip the small
    # defaults (v5e: 16 MiB). Double-buffered input/output tiles + weights
    # (double-buffered by the pipeline) + f32 activation temporaries.
    hps = [hp0] + [int(w.shape[0]) for w in hid_wts]
    vmem_est = (2 * (2 * din_pad * tile_b + 4 * HEAD_ROWS * tile_b)
                + 2 * param_bytes + 3 * 4 * max(hps) * tile_b)
    vmem_limit = None
    if vmem_est > 14 * 2**20:
        vmem_limit = int(min(64 * 2**20, _round_up(vmem_est * 5 // 4, 2**20)))

    out = pl.pallas_call(
        _make_doubleq_kernel(n_hidden),
        out_shape=jax.ShapeDtypeStruct((HEAD_ROWS, b_pad), jnp.float32),
        grid=grid,
        in_specs=in_specs,
        out_specs=out_specs,
        compiler_params=pltpu.CompilerParams(
            dimension_semantics=("parallel",),
            vmem_limit_bytes=vmem_limit),
        cost_estimate=cost,
    )(xT, *packed_params)

    # .squeeze(-1) as in the torch module: q1, q2 are (B,)
    return out[0, :b], out[1, :b]


# --------------------------------------------------------------------------- #
# Pure-JAX reference (PyTorch semantics, f32)
# --------------------------------------------------------------------------- #
def doubleq_reference(observations, actions, params1, params2):
    x = jnp.concatenate([observations, actions], axis=-1)

    def net(xin, params):
        h = xin
        for (w, bb) in params[:-1]:
            h = jnp.maximum(h @ w + bb, 0.0)
        wq, bq = params[-1]
        return (h @ wq + bq)[:, 0]

    return net(x, params1), net(x, params2)


if __name__ == "__main__":
    # Small shapes consistent with DoubleQ(obs_dim=(12,), action_dim=4,
    # hidden_sizes=[32, 32], activation=ReLU)
    batch = 8
    obs_dim = 12
    action_dim = 4
    hidden_sizes = [32, 32]

    key = jax.random.PRNGKey(0)
    k_obs, k_act, k_par = jax.random.split(key, 3)
    observations = jax.random.normal(k_obs, (batch, obs_dim), jnp.float32)
    actions = jax.random.normal(k_act, (batch, action_dim), jnp.float32)

    params1, params2 = init_doubleq_params(k_par, obs_dim, action_dim,
                                           hidden_sizes)
    packed_params = pack_doubleq_params(params1, params2)

    q1, q2 = doubleq_forward(observations, actions, packed_params,
                             n_hidden=len(hidden_sizes))
    jax.block_until_ready((q1, q2))

    q1_ref, q2_ref = doubleq_reference(observations, actions, params1, params2)
    assert q1.shape == (batch,) and q2.shape == (batch,)
    # bf16 matmul operands -> loosened tolerance vs the f32 reference.
    assert jnp.allclose(q1, q1_ref, atol=5e-2, rtol=5e-2)
    assert jnp.allclose(q2, q2_ref, atol=5e-2, rtol=5e-2)

    print("KERNEL_OK")
</pallas_src>

<mosaic_0001>
module attributes {stable_mosaic.version = 11 : i64} {
  func.func @kernel(%arg0: i32, %arg1: memref<16x128xbf16, #tpu.memory_space<vmem>>, %arg2: memref<128x16xbf16, #tpu.memory_space<vmem>>, %arg3: memref<128x1xf32, #tpu.memory_space<vmem>>, %arg4: memref<128x128xbf16, #tpu.memory_space<vmem>>, %arg5: memref<128x1xf32, #tpu.memory_space<vmem>>, %arg6: memref<8x128xbf16, #tpu.memory_space<vmem>>, %arg7: memref<8x1xf32, #tpu.memory_space<vmem>>, %arg8: memref<8x128xf32, #tpu.memory_space<vmem>>) attributes {dimension_semantics = [#tpu.dimension_semantics<parallel>], iteration_bounds = array<i64: 1>, scalar_prefetch = 0 : i64, scratch_operands = 0 : i64, tpu.core_type = #tpu.core_type<tc>, window_params = [{transform_indices = @transform_0, window_bounds = array<i64: 16, 128>}, {pipeline_mode = #tpu.pipeline_mode<synchronous>, transform_indices = @transform_1, window_bounds = array<i64: 128, 16>}, {pipeline_mode = #tpu.pipeline_mode<synchronous>, transform_indices = @transform_2, window_bounds = array<i64: 128, 1>}, {pipeline_mode = #tpu.pipeline_mode<synchronous>, transform_indices = @transform_3, window_bounds = array<i64: 128, 128>}, {pipeline_mode = #tpu.pipeline_mode<synchronous>, transform_indices = @transform_4, window_bounds = array<i64: 128, 1>}, {pipeline_mode = #tpu.pipeline_mode<synchronous>, transform_indices = @transform_5, window_bounds = array<i64: 8, 128>}, {pipeline_mode = #tpu.pipeline_mode<synchronous>, transform_indices = @transform_6, window_bounds = array<i64: 8, 1>}, {transform_indices = @transform_7, window_bounds = array<i64: 8, 128>}]} {
    %c0 = arith.constant 0 : index
    %c0_0 = arith.constant 0 : index
    %0 = vector.load %arg2[%c0, %c0_0] : memref<128x16xbf16, #tpu.memory_space<vmem>>, vector<128x16xbf16>
    %c0_1 = arith.constant 0 : index
    %c0_2 = arith.constant 0 : index
    %1 = vector.load %arg1[%c0_1, %c0_2] : memref<16x128xbf16, #tpu.memory_space<vmem>>, vector<16x128xbf16>
    %cst = arith.constant dense<0.000000e+00> : vector<128x128xf32>
    %2 = tpu.matmul %0, %1, %cst {dimension_numbers = #tpu.dot_dimension_numbers<[1], [0], [0], [1], [0, 0, 1, 1], [], []>} : vector<128x16xbf16>, vector<16x128xbf16>, vector<128x128xf32> -> vector<128x128xf32>
    %c0_3 = arith.constant 0 : index
    %c0_4 = arith.constant 0 : index
    %3 = vector.load %arg3[%c0_3, %c0_4] : memref<128x1xf32, #tpu.memory_space<vmem>>, vector<128x1xf32>
    %4 = vector.broadcast %3 : vector<128x1xf32> to vector<128x128xf32>
    %5 = arith.addf %2, %4 : vector<128x128xf32>
    %cst_5 = arith.constant 0.000000e+00 : f32
    %6 = vector.broadcast %cst_5 : f32 to vector<128x128xf32>
    %7 = arith.maximumf %5, %6 : vector<128x128xf32>
    %c0_6 = arith.constant 0 : index
    %c0_7 = arith.constant 0 : index
    %8 = vector.load %arg4[%c0_6, %c0_7] : memref<128x128xbf16, #tpu.memory_space<vmem>>, vector<128x128xbf16>
    %c0_8 = arith.constant 0 : index
    %c0_9 = arith.constant 0 : index
    %9 = vector.load %arg5[%c0_8, %c0_9] : memref<128x1xf32, #tpu.memory_space<vmem>>, vector<128x1xf32>
    %10 = arith.truncf %7 : vector<128x128xf32> to vector<128x128xbf16>
    %cst_10 = arith.constant dense<0.000000e+00> : vector<128x128xf32>
    %11 = tpu.matmul %8, %10, %cst_10 {dimension_numbers = #tpu.dot_dimension_numbers<[1], [0], [0], [1], [0, 0, 1, 1], [], []>} : vector<128x128xbf16>, vector<128x128xbf16>, vector<128x128xf32> -> vector<128x128xf32>
    %12 = vector.broadcast %9 : vector<128x1xf32> to vector<128x128xf32>
    %13 = arith.addf %11, %12 : vector<128x128xf32>
    %cst_11 = arith.constant 0.000000e+00 : f32
    %14 = vector.broadcast %cst_11 : f32 to vector<128x128xf32>
    %15 = arith.maximumf %13, %14 : vector<128x128xf32>
    %c0_12 = arith.constant 0 : index
    %c0_13 = arith.constant 0 : index
    %16 = vector.load %arg6[%c0_12, %c0_13] : memref<8x128xbf16, #tpu.memory_space<vmem>>, vector<8x128xbf16>
    %17 = arith.truncf %15 : vector<128x128xf32> to vector<128x128xbf16>
    %cst_14 = arith.constant dense<0.000000e+00> : vector<8x128xf32>
    %18 = tpu.matmul %16, %17, %cst_14 {dimension_numbers = #tpu.dot_dimension_numbers<[1], [0], [0], [1], [0, 0, 1, 1], [], []>} : vector<8x128xbf16>, vector<128x128xbf16>, vector<8x128xf32> -> vector<8x128xf32>
    %c0_15 = arith.constant 0 : index
    %c0_16 = arith.constant 0 : index
    %19 = vector.load %arg7[%c0_15, %c0_16] : memref<8x1xf32, #tpu.memory_space<vmem>>, vector<8x1xf32>
    %20 = vector.broadcast %19 : vector<8x1xf32> to vector<8x128xf32>
    %21 = arith.addf %18, %20 : vector<8x128xf32>
    %c0_17 = arith.constant 0 : index
    %c0_18 = arith.constant 0 : index
    %22 = vector.load %arg8[%c0_17, %c0_18] : memref<8x128xf32, #tpu.memory_space<vmem>>, vector<8x128xf32>
    tpu.vector_store %arg8[%c0_17, %c0_18], %21 {strides = array<i32>} : memref<8x128xf32, #tpu.memory_space<vmem>>, vector<8x128xf32>,
    return
  }
  func.func @transform_0(%arg0: i32) -> (i32, i32) {
    %c0_i32 = arith.constant 0 : i32
    %c0_i32_0 = arith.constant 0 : i32
    return %c0_i32, %arg0 : i32, i32
  }
  func.func @transform_1(%arg0: i32) -> (i32, i32) {
    %c0_i32 = arith.constant 0 : i32
    %c0_i32_0 = arith.constant 0 : i32
    %c0_i32_1 = arith.constant 0 : i32
    return %c0_i32, %c0_i32_0 : i32, i32
  }
  func.func @transform_2(%arg0: i32) -> (i32, i32) {
    %c0_i32 = arith.constant 0 : i32
    %c0_i32_0 = arith.constant 0 : i32
    %c0_i32_1 = arith.constant 0 : i32
    return %c0_i32, %c0_i32_0 : i32, i32
  }
  func.func @transform_3(%arg0: i32) -> (i32, i32) {
    %c0_i32 = arith.constant 0 : i32
    %c0_i32_0 = arith.constant 0 : i32
    %c0_i32_1 = arith.constant 0 : i32
    return %c0_i32, %c0_i32_0 : i32, i32
  }
  func.func @transform_4(%arg0: i32) -> (i32, i32) {
    %c0_i32 = arith.constant 0 : i32
    %c0_i32_0 = arith.constant 0 : i32
    %c0_i32_1 = arith.constant 0 : i32
    return %c0_i32, %c0_i32_0 : i32, i32
  }
  func.func @transform_5(%arg0: i32) -> (i32, i32) {
    %c0_i32 = arith.constant 0 : i32
    %c0_i32_0 = arith.constant 0 : i32
    %c0_i32_1 = arith.constant 0 : i32
    return %c0_i32, %c0_i32_0 : i32, i32
  }
  func.func @transform_6(%arg0: i32) -> (i32, i32) {
    %c0_i32 = arith.constant 0 : i32
    %c0_i32_0 = arith.constant 0 : i32
    %c0_i32_1 = arith.constant 0 : i32
    return %c0_i32, %c0_i32_0 : i32, i32
  }
  func.func @transform_7(%arg0: i32) -> (i32, i32) {
    %c0_i32 = arith.constant 0 : i32
    %c0_i32_0 = arith.constant 0 : i32
    return %c0_i32, %arg0 : i32, i32
  }
}

</mosaic_0001>

<llo_original>
// kernel: doubleq_forward.1
$region0: #{doubleq_forward.1}
  #allocation0 [shape = 'u32[]', space=smem, size = 0x4, offset = 0x4, fixed_abs, tag = 'smem constant byte address 0x4 - core index']
  #allocation1 [shape = 'u32[72,128]{1,0:T(1,128)}', space=vmem, size = 0x9000, scoped, tag = 'internal scratch']
  %s0 = inlined_call_operand.vmem [shape: bf16[16,128], index: 0, kind: input, shape index: {}]
  %s1 = inlined_call_operand.vmem [shape: bf16[128,16], index: 1, kind: input, shape index: {}]
  %s2 = inlined_call_operand.vmem [shape: f32[128,1], index: 2, kind: input, shape index: {}]
  %s3 = inlined_call_operand.vmem [shape: bf16[128,128], index: 3, kind: input, shape index: {}]
  %s4 = inlined_call_operand.vmem [shape: f32[128,1], index: 4, kind: input, shape index: {}]
  %s5 = inlined_call_operand.vmem [shape: bf16[8,128], index: 5, kind: input, shape index: {}]
  %s6 = inlined_call_operand.vmem [shape: f32[8,1], index: 6, kind: input, shape index: {}]
  %s7 = inlined_call_operand.vmem [shape: f32[8,128], index: 7, kind: output, shape index: {}]
  %s8 = sld [smem:[#allocation0]]
  $region38: #{doubleq_forward.1} parent=0
    _
  %s10 = ssub.s32 1, %s8
  %s11 = scalar_select 0, %s10, %s8
  // Predicated region
  $region2: #{doubleq_forward.1} parent=0 // pred_check
    _
  $region3: #{doubleq_forward.1} parent=0 // pred_check_branch
    %13 = sbr.rel (0) target = $region5
  $region4: #{doubleq_forward.1} parent=0 // pred_region
    _
  $region5: #{doubleq_forward.1} parent=0 // pred_fallthru
    _
  // Predicated region
  $region6: #{doubleq_forward.1} parent=0 // pred_check
    _
  $region7: #{doubleq_forward.1} parent=0 // pred_check_branch
    %15 = sbr.rel (0) target = $region9
  $region8: #{doubleq_forward.1} parent=0 // pred_region
    _
  $region9: #{doubleq_forward.1} parent=0 // pred_fallthru
    _
  // Predicated region
  $region10: #{doubleq_forward.1} parent=0 // pred_check
    _
  $region11: #{doubleq_forward.1} parent=0 // pred_check_branch
    %17 = sbr.rel (0) target = $region13
  $region12: #{doubleq_forward.1} parent=0 // pred_region
    _
  $region13: #{doubleq_forward.1} parent=0 // pred_fallthru
    _
  // Predicated region
  $region14: #{doubleq_forward.1} parent=0 // pred_check
    _
  $region15: #{doubleq_forward.1} parent=0 // pred_check_branch
    %19 = sbr.rel (0) target = $region17
  $region16: #{doubleq_forward.1} parent=0 // pred_region
    _
  $region17: #{doubleq_forward.1} parent=0 // pred_fallthru
    _
  // Predicated region
  $region18: #{doubleq_forward.1} parent=0 // pred_check
    _
  $region19: #{doubleq_forward.1} parent=0 // pred_check_branch
    %21 = sbr.rel (0) target = $region21
  $region20: #{doubleq_forward.1} parent=0 // pred_region
    _
  $region21: #{doubleq_forward.1} parent=0 // pred_fallthru
    _
  // Predicated region
  $region22: #{doubleq_forward.1} parent=0 // pred_check
    _
  $region23: #{doubleq_forward.1} parent=0 // pred_check_branch
    %23 = sbr.rel (0) target = $region25
  $region24: #{doubleq_forward.1} parent=0 // pred_region
    _
  $region25: #{doubleq_forward.1} parent=0 // pred_fallthru
    _
  // Predicated region
  $region26: #{doubleq_forward.1} parent=0 // pred_check
    _
  $region27: #{doubleq_forward.1} parent=0 // pred_check_branch
    %25 = sbr.rel (0) target = $region29
  $region28: #{doubleq_forward.1} parent=0 // pred_region
    _
  $region29: #{doubleq_forward.1} parent=0 // pred_fallthru
    _
  %v27 = vld [vmem:[%s1] sm:$0xf]
  %v28 = vld [vmem:[%s1 + $0x4] sm:$0xf]
  %v29 = vld [vmem:[%s1 + $0x8] sm:$0xf]
  %v30 = vld [vmem:[%s1 + $0xc] sm:$0xf]
  %v31 = vld [vmem:[%s1 + $0x10] sm:$0xf]
  %v32 = vld [vmem:[%s1 + $0x14] sm:$0xf]
  %v33 = vld [vmem:[%s1 + $0x18] sm:$0xf]
  %v34 = vld [vmem:[%s1 + $0x1c] sm:$0xf]
  %v35 = vld [vmem:[%s1 + $0x20] sm:$0xf]
  %v36 = vld [vmem:[%s1 + $0x24] sm:$0xf]
  %v37 = vld [vmem:[%s1 + $0x28] sm:$0xf]
  %v38 = vld [vmem:[%s1 + $0x2c] sm:$0xf]
  %v39 = vld [vmem:[%s1 + $0x30] sm:$0xf]
  %v40 = vld [vmem:[%s1 + $0x34] sm:$0xf]
  %v41 = vld [vmem:[%s1 + $0x38] sm:$0xf]
  %v42 = vld [vmem:[%s1 + $0x3c] sm:$0xf]
  %v43 = vld [vmem:[%s0] sm:$0xf]
  %v44 = vld [vmem:[%s0 + $0x4] sm:$0xf]
  %v45 = vld [vmem:[%s2] sm:$0xff]
  %v46 = vld [vmem:[%s2 + $0x8] sm:$0xff]
  %v47 = vld [vmem:[%s2 + $0x10] sm:$0xff]
  %v48 = vld [vmem:[%s2 + $0x18] sm:$0xff]
  %v49 = vld [vmem:[%s2 + $0x20] sm:$0xff]
  %v50 = vld [vmem:[%s2 + $0x28] sm:$0xff]
  %v51 = vld [vmem:[%s2 + $0x30] sm:$0xff]
  %v52 = vld [vmem:[%s2 + $0x38] sm:$0xff]
  %v53 = vld [vmem:[%s2 + $0x40] sm:$0xff]
  %v54 = vld [vmem:[%s2 + $0x48] sm:$0xff]
  %v55 = vld [vmem:[%s2 + $0x50] sm:$0xff]
  %v56 = vld [vmem:[%s2 + $0x58] sm:$0xff]
  %v57 = vld [vmem:[%s2 + $0x60] sm:$0xff]
  %v58 = vld [vmem:[%s2 + $0x68] sm:$0xff]
  %v59 = vld [vmem:[%s2 + $0x70] sm:$0xff]
  %v60 = vld [vmem:[%s2 + $0x78] sm:$0xff]
  %62 = vset.pattern.permute.xlu0 0
  %63 = vperm.xlu0 %62, %v45
  %v64 = vpop.permute.xlu0 %63
  %67 = vset.pattern.permute.xlu0 0
  %68 = vperm.xlu0 %67, %v46
  %v69 = vpop.permute.xlu0 %68
  %72 = vset.pattern.permute.xlu0 0
  %73 = vperm.xlu0 %72, %v47
  %v74 = vpop.permute.xlu0 %73
  %77 = vset.pattern.permute.xlu0 0
  %78 = vperm.xlu0 %77, %v48
  %v79 = vpop.permute.xlu0 %78
  %82 = vset.pattern.permute.xlu0 0
  %83 = vperm.xlu0 %82, %v49
  %v84 = vpop.permute.xlu0 %83
  %87 = vset.pattern.permute.xlu0 0
  %88 = vperm.xlu0 %87, %v50
  %v89 = vpop.permute.xlu0 %88
  %92 = vset.pattern.permute.xlu0 0
  %93 = vperm.xlu0 %92, %v51
  %v94 = vpop.permute.xlu0 %93
  %97 = vset.pattern.permute.xlu0 0
  %98 = vperm.xlu0 %97, %v52
  %v99 = vpop.permute.xlu0 %98
  %102 = vset.pattern.permute.xlu0 0
  %103 = vperm.xlu0 %102, %v53
  %v104 = vpop.permute.xlu0 %103
  %107 = vset.pattern.permute.xlu0 0
  %108 = vperm.xlu0 %107, %v54
  %v109 = vpop.permute.xlu0 %108
  %112 = vset.pattern.permute.xlu0 0
  %113 = vperm.xlu0 %112, %v55
  %v114 = vpop.permute.xlu0 %113
  %117 = vset.pattern.permute.xlu0 0
  %118 = vperm.xlu0 %117, %v56
  %v119 = vpop.permute.xlu0 %118
  %122 = vset.pattern.permute.xlu0 0
  %123 = vperm.xlu0 %122, %v57
  %v124 = vpop.permute.xlu0 %123
  %127 = vset.pattern.permute.xlu0 0
  %128 = vperm.xlu0 %127, %v58
  %v129 = vpop.permute.xlu0 %128
  %132 = vset.pattern.permute.xlu0 0
  %133 = vperm.xlu0 %132, %v59
  %v134 = vpop.permute.xlu0 %133
  %137 = vset.pattern.permute.xlu0 0
  %138 = vperm.xlu0 %137, %v60
  %v139 = vpop.permute.xlu0 %138
  %v157 = vunpack.c.l.b16 %v27
  %v158 = vunpack.c.l.b16 %v28
  %v159 = vunpack.c.l.b16 %v29
  %v160 = vunpack.c.l.b16 %v30
  %v161 = vunpack.c.l.b16 %v31
  %v162 = vunpack.c.l.b16 %v32
  %v163 = vunpack.c.l.b16 %v33
  %v164 = vunpack.c.l.b16 %v34
  %v165 = vunpack.c.l.b16 %v35
  %v166 = vunpack.c.l.b16 %v36
  %v167 = vunpack.c.l.b16 %v37
  %v168 = vunpack.c.l.b16 %v38
  %v169 = vunpack.c.l.b16 %v39
  %v170 = vunpack.c.l.b16 %v40
  %v171 = vunpack.c.l.b16 %v41
  %v172 = vunpack.c.l.b16 %v42
  %v173 = vpack.c.b16 %v158, %v157
  %v174 = vpack.c.b16 %v160, %v159
  %v175 = vpack.c.b16 %v162, %v161
  %v176 = vpack.c.b16 %v164, %v163
  %v177 = vpack.c.b16 %v166, %v165
  %v178 = vpack.c.b16 %v168, %v167
  %v179 = vpack.c.b16 %v170, %v169
  %v180 = vpack.c.b16 %v172, %v171
  %v183 = vunpack.c.l.b16 %v43
  %v184 = vunpack.c.l.b16 %v44
  %v185 = vpack.c.b16 %v184, %v183
  %vm187 = vcmask 130048
  %v189 = vsel %vm187, %v173, 0
  %v192 = vsel %vm187, %v174, 0
  %v195 = vsel %vm187, %v175, 0
  %v198 = vsel %vm187, %v176, 0
  %v201 = vsel %vm187, %v177, 0
  %v204 = vsel %vm187, %v178, 0
  %v207 = vsel %vm187, %v179, 0
  %v210 = vsel %vm187, %v180, 0
  %212 = vmatpush.bf16.msra.mxu0 0
  %213 = vmatpush.bf16.msra.mxu0 0
  %214 = vmatpush.bf16.msra.mxu0 0
  %215 = vmatpush.bf16.msra.mxu0 0
  %216 = vmatpush.bf16.msra.mxu0 0
  %217 = vmatpush.bf16.msra.mxu0 0
  %218 = vmatpush.bf16.msra.mxu0 0
  %219 = vmatpush.bf16.msra.mxu0 %v185
  %220 = vmatmul.bf16.gmra.mxu0 %v189
  %v221 = vpop.f32.mrf.mxu0
  %v222 = vadd.f32 %v64, %v221
  %v223 = vpop.f32.mrf.mxu0
  %v224 = vadd.f32 %v69, %v223
  %225 = vmatmul.bf16.gmra.mxu0 %v192
  %v226 = vpop.f32.mrf.mxu0
  %v227 = vadd.f32 %v74, %v226
  %v228 = vpop.f32.mrf.mxu0
  %v229 = vadd.f32 %v79, %v228
  %230 = vmatmul.bf16.gmra.mxu0 %v195
  %v231 = vpop.f32.mrf.mxu0
  %v232 = vadd.f32 %v84, %v231
  %v233 = vpop.f32.mrf.mxu0
  %v234 = vadd.f32 %v89, %v233
  %235 = vmatmul.bf16.gmra.mxu0 %v198
  %v236 = vpop.f32.mrf.mxu0
  %v237 = vadd.f32 %v94, %v236
  %v238 = vpop.f32.mrf.mxu0
  %v239 = vadd.f32 %v99, %v238
  %240 = vmatmul.bf16.gmra.mxu0 %v201
  %v241 = vpop.f32.mrf.mxu0
  %v242 = vadd.f32 %v104, %v241
  %v243 = vpop.f32.mrf.mxu0
  %v244 = vadd.f32 %v109, %v243
  %245 = vmatmul.bf16.gmra.mxu0 %v204
  %v246 = vpop.f32.mrf.mxu0
  %v247 = vadd.f32 %v114, %v246
  %v248 = vpop.f32.mrf.mxu0
  %v249 = vadd.f32 %v119, %v248
  %250 = vmatmul.bf16.gmra.mxu0 %v207
  %v251 = vpop.f32.mrf.mxu0
  %v252 = vadd.f32 %v124, %v251
  %v253 = vpop.f32.mrf.mxu0
  %v254 = vadd.f32 %v129, %v253
  %255 = vmatmul.bf16.gmra.mxu0 %v210
  %v256 = vpop.f32.mrf.mxu0
  %v257 = vadd.f32 %v134, %v256
  %v258 = vpop.f32.mrf.mxu0
  %v259 = vadd.f32 %v139, %v258
  %260 = vdwg.mxu0
  %v261 = vmax.f32 %v222, 0.0
  %v262 = vmax.f32 %v224, 0.0
  %v263 = vmax.f32 %v227, 0.0
  %v264 = vmax.f32 %v229, 0.0
  %v265 = vmax.f32 %v232, 0.0
  %v266 = vmax.f32 %v234, 0.0
  %v267 = vmax.f32 %v237, 0.0
  %v268 = vmax.f32 %v239, 0.0
  %v269 = vmax.f32 %v242, 0.0
  %v270 = vmax.f32 %v244, 0.0
  %v271 = vmax.f32 %v247, 0.0
  %v272 = vmax.f32 %v249, 0.0
  %v273 = vmax.f32 %v252, 0.0
  %v274 = vmax.f32 %v254, 0.0
  %v275 = vmax.f32 %v257, 0.0
  %v276 = vmax.f32 %v259, 0.0
  %v277 = vld [vmem:[%s3] sm:$0xf]
  %v278 = vld [vmem:[%s3 + $0x4] sm:$0xf]
  %v279 = vld [vmem:[%s3 + $0x8] sm:$0xf]
  %v280 = vld [vmem:[%s3 + $0xc] sm:$0xf]
  %v281 = vld [vmem:[%s3 + $0x10] sm:$0xf]
  %v282 = vld [vmem:[%s3 + $0x14] sm:$0xf]
  %v283 = vld [vmem:[%s3 + $0x18] sm:$0xf]
  %v284 = vld [vmem:[%s3 + $0x1c] sm:$0xf]
  %v285 = vld [vmem:[%s3 + $0x20] sm:$0xf]
  %v286 = vld [vmem:[%s3 + $0x24] sm:$0xf]
  %v287 = vld [vmem:[%s3 + $0x28] sm:$0xf]
  %v288 = vld [vmem:[%s3 + $0x2c] sm:$0xf]
  %v289 = vld [vmem:[%s3 + $0x30] sm:$0xf]
  %v290 = vld [vmem:[%s3 + $0x34] sm:$0xf]
  %v291 = vld [vmem:[%s3 + $0x38] sm:$0xf]
  %v292 = vld [vmem:[%s3 + $0x3c] sm:$0xf]
  %v293 = vld [vmem:[%s4] sm:$0xff]
  %v294 = vld [vmem:[%s4 + $0x8] sm:$0xff]
  %v295 = vld [vmem:[%s4 + $0x10] sm:$0xff]
  %v296 = vld [vmem:[%s4 + $0x18] sm:$0xff]
  %v297 = vld [vmem:[%s4 + $0x20] sm:$0xff]
  %v298 = vld [vmem:[%s4 + $0x28] sm:$0xff]
  %v299 = vld [vmem:[%s4 + $0x30] sm:$0xff]
  %v300 = vld [vmem:[%s4 + $0x38] sm:$0xff]
  %v301 = vld [vmem:[%s4 + $0x40] sm:$0xff]
  %v302 = vld [vmem:[%s4 + $0x48] sm:$0xff]
  %v303 = vld [vmem:[%s4 + $0x50] sm:$0xff]
  %v304 = vld [vmem:[%s4 + $0x58] sm:$0xff]
  %v305 = vld [vmem:[%s4 + $0x60] sm:$0xff]
  %v306 = vld [vmem:[%s4 + $0x68] sm:$0xff]
  %v307 = vld [vmem:[%s4 + $0x70] sm:$0xff]
  %v308 = vld [vmem:[%s4 + $0x78] sm:$0xff]
  %v309 = vpack.c.bf16 %v262, %v261
  %v310 = vpack.c.bf16 %v264, %v263
  %v311 = vpack.c.bf16 %v266, %v265
  %v312 = vpack.c.bf16 %v268, %v267
  %v313 = vpack.c.bf16 %v270, %v269
  %v314 = vpack.c.bf16 %v272, %v271
  %v315 = vpack.c.bf16 %v274, %v273
  %v316 = vpack.c.bf16 %v276, %v275
  %318 = vset.pattern.permute.xlu0 0
  %319 = vperm.xlu0 %318, %v293
  %v320 = vpop.permute.xlu0 %319
  %323 = vset.pattern.permute.xlu0 0
  %324 = vperm.xlu0 %323, %v294
  %v325 = vpop.permute.xlu0 %324
  %328 = vset.pattern.permute.xlu0 0
  %329 = vperm.xlu0 %328, %v295
  %v330 = vpop.permute.xlu0 %329
  %333 = vset.pattern.permute.xlu0 0
  %334 = vperm.xlu0 %333, %v296
  %v335 = vpop.permute.xlu0 %334
  %338 = vset.pattern.permute.xlu0 0
  %339 = vperm.xlu0 %338, %v297
  %v340 = vpop.permute.xlu0 %339
  %343 = vset.pattern.permute.xlu0 0
  %344 = vperm.xlu0 %343, %v298
  %v345 = vpop.permute.xlu0 %344
  %348 = vset.pattern.permute.xlu0 0
  %349 = vperm.xlu0 %348, %v299
  %v350 = vpop.permute.xlu0 %349
  %353 = vset.pattern.permute.xlu0 0
  %354 = vperm.xlu0 %353, %v300
  %v355 = vpop.permute.xlu0 %354
  %358 = vset.pattern.permute.xlu0 0
  %359 = vperm.xlu0 %358, %v301
  %v360 = vpop.permute.xlu0 %359
  %363 = vset.pattern.permute.xlu0 0
  %364 = vperm.xlu0 %363, %v302
  %v365 = vpop.permute.xlu0 %364
  %368 = vset.pattern.permute.xlu0 0
  %369 = vperm.xlu0 %368, %v303
  %v370 = vpop.permute.xlu0 %369
  %373 = vset.pattern.permute.xlu0 0
  %374 = vperm.xlu0 %373, %v304
  %v375 = vpop.permute.xlu0 %374
  %378 = vset.pattern.permute.xlu0 0
  %379 = vperm.xlu0 %378, %v305
  %v380 = vpop.permute.xlu0 %379
  %383 = vset.pattern.permute.xlu0 0
  %384 = vperm.xlu0 %383, %v306
  %v385 = vpop.permute.xlu0 %384
  %388 = vset.pattern.permute.xlu0 0
  %389 = vperm.xlu0 %388, %v307
  %v390 = vpop.permute.xlu0 %389
  %393 = vset.pattern.permute.xlu0 0
  %394 = vperm.xlu0 %393, %v308
  %v395 = vpop.permute.xlu0 %394
  %v413 = vunpack.c.l.b16 %v277
  %v414 = vunpack.c.l.b16 %v278
  %v415 = vunpack.c.l.b16 %v279
  %v416 = vunpack.c.l.b16 %v280
  %v417 = vunpack.c.l.b16 %v281
  %v418 = vunpack.c.l.b16 %v282
  %v419 = vunpack.c.l.b16 %v283
  %v420 = vunpack.c.l.b16 %v284
  %v421 = vunpack.c.l.b16 %v285
  %v422 = vunpack.c.l.b16 %v286
  %v423 = vunpack.c.l.b16 %v287
  %v424 = vunpack.c.l.b16 %v288
  %v425 = vunpack.c.l.b16 %v289
  %v426 = vunpack.c.l.b16 %v290
  %v427 = vunpack.c.l.b16 %v291
  %v428 = vunpack.c.l.b16 %v292
  %v429 = vpack.c.b16 %v414, %v413
  %v430 = vpack.c.b16 %v416, %v415
  %v431 = vpack.c.b16 %v418, %v417
  %v432 = vpack.c.b16 %v420, %v419
  %v433 = vpack.c.b16 %v422, %v421
  %v434 = vpack.c.b16 %v424, %v423
  %v435 = vpack.c.b16 %v426, %v425
  %v436 = vpack.c.b16 %v428, %v427
  %445 = vmatpush.bf16.msra.mxu0 %v316
  %446 = vmatpush.bf16.msra.mxu0 %v315
  %447 = vmatpush.bf16.msra.mxu0 %v314
  %448 = vmatpush.bf16.msra.mxu0 %v313
  %449 = vmatpush.bf16.msra.mxu0 %v312
  %450 = vmatpush.bf16.msra.mxu0 %v311
  %451 = vmatpush.bf16.msra.mxu0 %v310
  %452 = vmatpush.bf16.msra.mxu0 %v309
  %453 = vmatmul.bf16.gmra.mxu0 %v429
  %v454 = vpop.f32.mrf.mxu0
  %v455 = vadd.f32 %v320, %v454
  %v456 = vpop.f32.mrf.mxu0
  %v457 = vadd.f32 %v325, %v456
  %458 = vmatmul.bf16.gmra.mxu0 %v430
  %v459 = vpop.f32.mrf.mxu0
  %v460 = vadd.f32 %v330, %v459
  %v461 = vpop.f32.mrf.mxu0
  %v462 = vadd.f32 %v335, %v461
  %463 = vmatmul.bf16.gmra.mxu0 %v431
  %v464 = vpop.f32.mrf.mxu0
  %v465 = vadd.f32 %v340, %v464
  %v466 = vpop.f32.mrf.mxu0
  %v467 = vadd.f32 %v345, %v466
  %468 = vmatmul.bf16.gmra.mxu0 %v432
  %v469 = vpop.f32.mrf.mxu0
  %v470 = vadd.f32 %v350, %v469
  %v471 = vpop.f32.mrf.mxu0
  %v472 = vadd.f32 %v355, %v471
  %473 = vmatmul.bf16.gmra.mxu0 %v433
  %v474 = vpop.f32.mrf.mxu0
  %v475 = vadd.f32 %v360, %v474
  %v476 = vpop.f32.mrf.mxu0
  %v477 = vadd.f32 %v365, %v476
  %478 = vmatmul.bf16.gmra.mxu0 %v434
  %v479 = vpop.f32.mrf.mxu0
  %v480 = vadd.f32 %v370, %v479
  %v481 = vpop.f32.mrf.mxu0
  %v482 = vadd.f32 %v375, %v481
  %483 = vmatmul.bf16.gmra.mxu0 %v435
  %v484 = vpop.f32.mrf.mxu0
  %v485 = vadd.f32 %v380, %v484
  %v486 = vpop.f32.mrf.mxu0
  %v487 = vadd.f32 %v385, %v486
  %488 = vmatmul.bf16.gmra.mxu0 %v436
  %v489 = vpop.f32.mrf.mxu0
  %v490 = vadd.f32 %v390, %v489
  %v491 = vpop.f32.mrf.mxu0
  %v492 = vadd.f32 %v395, %v491
  %493 = vdwg.mxu0
  %v494 = vmax.f32 %v455, 0.0
  %v495 = vmax.f32 %v457, 0.0
  %v496 = vmax.f32 %v460, 0.0
  %v497 = vmax.f32 %v462, 0.0
  %v498 = vmax.f32 %v465, 0.0
  %v499 = vmax.f32 %v467, 0.0
  %v500 = vmax.f32 %v470, 0.0
  %v501 = vmax.f32 %v472, 0.0
  %v502 = vmax.f32 %v475, 0.0
  %v503 = vmax.f32 %v477, 0.0
  %v504 = vmax.f32 %v480, 0.0
  %v505 = vmax.f32 %v482, 0.0
  %v506 = vmax.f32 %v485, 0.0
  %v507 = vmax.f32 %v487, 0.0
  %v508 = vmax.f32 %v490, 0.0
  %v509 = vmax.f32 %v492, 0.0
  %v510 = vld [vmem:[%s5] sm:$0xf]
  %v511 = vpack.c.bf16 %v495, %v494
  %v512 = vpack.c.bf16 %v497, %v496
  %v513 = vpack.c.bf16 %v499, %v498
  %v514 = vpack.c.bf16 %v501, %v500
  %v515 = vpack.c.bf16 %v503, %v502
  %v516 = vpack.c.bf16 %v505, %v504
  %v517 = vpack.c.bf16 %v507, %v506
  %v518 = vpack.c.bf16 %v509, %v508
  %v519 = vld [vmem:[%s6] sm:$0xff]
  %521 = vset.pattern.permute.xlu0 0
  %522 = vperm.xlu0 %521, %v519
  %v523 = vpop.permute.xlu0 %522
  %525 = vmatpush.bf16.msra.mxu0 %v518
  %526 = vmatpush.bf16.msra.mxu0 %v517
  %527 = vmatpush.bf16.msra.mxu0 %v516
  %528 = vmatpush.bf16.msra.mxu0 %v515
  %529 = vmatpush.bf16.msra.mxu0 %v514
  %530 = vmatpush.bf16.msra.mxu0 %v513
  %531 = vmatpush.bf16.msra.mxu0 %v512
  %532 = vmatpush.bf16.msra.mxu0 %v511
  %533 = vmatmul.bf16.gmra.mxu0 %v510
  %v534 = vpop.f32.mrf.mxu0
  %v535 = vadd.f32 %v523, %v534
  %v536 = vpop.f32.mrf.mxu0
  %537 = vdwg.mxu0
  %538 = vst [vmem:[%s7] sm:$0xff] %v535
  // Predicated region
  $region30: #{doubleq_forward.1} parent=0 // pred_check
    _
  $region31: #{doubleq_forward.1} parent=0 // pred_check_branch
    %540 = sbr.rel (0) target = $region33
  $region32: #{doubleq_forward.1} parent=0 // pred_region
    _
  $region33: #{doubleq_forward.1} parent=0 // pred_fallthru
    _
  // Predicated region
  $region34: #{doubleq_forward.1} parent=0 // pred_check
    _
  $region35: #{doubleq_forward.1} parent=0 // pred_check_branch
    %542 = sbr.rel (0) target = $region37
  $region36: #{doubleq_forward.1} parent=0 // pred_region
    _
  $region37: #{doubleq_forward.1} parent=0 // pred_fallthru
    _

</llo_original>
